<compile_context>
chip_gen: v5e
topology: v5e:2x2
jax: 0.10.0
libtpu: 0.0.40
codegen_flags: <defaults>
</compile_context>

<pallas_src>
import jax
import jax.numpy as jnp
from jax.experimental import pallas as pl
from jax.experimental.pallas import tpu as pltpu

HIDDEN = 256
OUT_LANES = 128  # packed output lane width: [value | alpha | beta | zero pad]


def _softplus(x):
    # Numerically-stable softplus; matches torch.nn.Softplus(beta=1) (the
    # threshold-20 linearization differs by <2e-9, far below tolerance).
    return jnp.log1p(jnp.exp(-jnp.abs(x))) + jnp.maximum(x, 0.0)


def bipedal_kernel(
    x_ref,              # (TB, S)        f32   raw input tile
    w1_ref, b1_ref,     # (S, 256) bf16, (1, 256) f32   backbone Linear (+ReLU)
    wall_ref, ball_ref, # (256, 128) bf16, (1, 128) f32 fused critic+actor_fc∘heads
    out_ref,            # (TB, 128) f32  packed [value | alpha | beta | pad]
):
    # Cast the input tile in-kernel (avoids an extra XLA launch outside).
    xb = x_ref[...].astype(jnp.bfloat16)

    # Matmul 1: backbone Linear + ReLU (f32 accumulate, f32 activation).
    h = jnp.dot(xb, w1_ref[...], preferred_element_type=jnp.float32)
    h = jnp.maximum(h + b1_ref[...], 0.0)
    hb = h.astype(jnp.bfloat16)

    # Matmul 2: ONE packed head matmul.  Lane 0 = critic value (raw affine),
    # lanes 1..1+2A = (actor_fc composed with alpha/beta heads), rest = 0-pad.
    z = jnp.dot(hb, wall_ref[...], preferred_element_type=jnp.float32) + ball_ref[...]

    # Softplus + 1 over the whole 128-lane slab (pad lanes are don't-care and
    # the stable softplus never produces inf/NaN), then select the raw value
    # back into lane 0 -> single unmasked lane-dense store.
    head = _softplus(z) + 1.0
    col = jax.lax.broadcasted_iota(jnp.int32, out_ref.shape, 1)
    out_ref[...] = jnp.where(col == 0, z, head)


def pack_params(params, action_dim):
    """One-time repack: compose actor_fc into the alpha/beta heads, pack the
    critic into lane 0 of the same (256, 128) matrix, cast weights to bf16."""
    A = action_dim
    assert 1 + 2 * A <= OUT_LANES, "action_dim too large for packed output slab"
    hi = jax.lax.Precision.HIGHEST

    # Lane-padded alpha/beta head weights/biases (f32).
    w_head = jnp.zeros((HIDDEN, OUT_LANES), jnp.float32)
    w_head = w_head.at[:, 1:1 + A].set(params["w_alpha"])
    w_head = w_head.at[:, 1 + A:1 + 2 * A].set(params["w_beta"])
    b_head = jnp.zeros((1, OUT_LANES), jnp.float32)
    b_head = b_head.at[:, 1:1 + A].set(params["b_alpha"])
    b_head = b_head.at[:, 1 + A:1 + 2 * A].set(params["b_beta"])

    # actor_fc has no activation after it -> compose algebraically (in f32).
    w_comp = jnp.dot(params["w_actor"], w_head, precision=hi)          # (256, 128)
    b_comp = jnp.dot(params["b_actor"], w_head, precision=hi) + b_head  # (1, 128)

    # Critic goes straight into lane 0 (column 0 of w_comp is zero by padding).
    w_all = w_comp.at[:, 0:1].set(params["w_critic"])
    b_all = b_comp.at[:, 0:1].set(params["b_critic"])

    return {
        "w1": params["w1"].astype(jnp.bfloat16), "b1": params["b1"],
        "w_all": w_all.astype(jnp.bfloat16), "b_all": b_all,
        "action_dim": A,
    }


def _num_tensorcores():
    """Best-effort: 2 TensorCores per chip on v7x, 1 on v5e/v6e."""
    try:
        kind = jax.devices()[0].device_kind.lower()
    except Exception:
        return 1
    return 2 if "v7" in kind else 1


def bipedal_forward(x, p):
    """x: (B, state_dim) f32; p: dict from pack_params. Returns (value, alpha, beta)."""
    B, S = x.shape
    A = p["action_dim"]

    # Per-generation tiling: one tile per TensorCore (v5e/v6e -> single grid
    # step; v7x -> two parallel tiles), capped so huge batches still pipeline.
    n_tc = _num_tensorcores()
    TB = min(1024, pl.cdiv(B, n_tc))
    TB = max(8, ((TB + 7) // 8) * 8)          # sublane-align
    Bp = pl.cdiv(B, TB) * TB

    xf = x
    if Bp != B:
        xf = jnp.pad(x, ((0, Bp - B), (0, 0)))

    args = (xf, p["w1"], p["b1"], p["w_all"], p["b_all"])

    def full(arr):  # whole array VMEM-resident, same block for every grid step
        return pl.BlockSpec(arr.shape, lambda i: (0, 0))

    flops = 2 * Bp * HIDDEN * (S + OUT_LANES)
    transcendentals = 2 * Bp * OUT_LANES      # exp + log1p per packed lane
    bytes_accessed = (sum(int(a.size) * a.dtype.itemsize for a in args)
                      + Bp * OUT_LANES * 4)

    out = pl.pallas_call(
        bipedal_kernel,
        out_shape=jax.ShapeDtypeStruct((Bp, OUT_LANES), jnp.float32),
        grid=(Bp // TB,),
        in_specs=[pl.BlockSpec((TB, S), lambda i: (i, 0))] + [full(a) for a in args[1:]],
        out_specs=pl.BlockSpec((TB, OUT_LANES), lambda i: (i, 0)),
        compiler_params=pltpu.CompilerParams(dimension_semantics=("parallel",)),
        cost_estimate=pl.CostEstimate(
            flops=flops, transcendentals=transcendentals, bytes_accessed=bytes_accessed),
    )(*args)

    out = out[:B]
    value = out[:, 0:1]
    alpha = out[:, 1:1 + A]
    beta = out[:, 1 + A:1 + 2 * A]
    return value, alpha, beta


def init_params(key, state_dim, action_dim, hidden=HIDDEN):
    """Deterministic init mimicking nn.Linear default (U(-1/sqrt(fan_in), +))."""
    def linear(k, fan_in, fan_out):
        kw, kb = jax.random.split(k)
        bound = 1.0 / jnp.sqrt(jnp.float32(fan_in))
        w = jax.random.uniform(kw, (fan_in, fan_out), jnp.float32, -bound, bound)
        b = jax.random.uniform(kb, (1, fan_out), jnp.float32, -bound, bound)
        return w, b

    k1, k2, k3, k4, k5 = jax.random.split(key, 5)
    w1, b1 = linear(k1, state_dim, hidden)
    wc, bc = linear(k2, hidden, 1)
    wa, ba = linear(k3, hidden, hidden)
    wal, bal = linear(k4, hidden, action_dim)
    wbe, bbe = linear(k5, hidden, action_dim)
    return {"w1": w1, "b1": b1, "w_critic": wc, "b_critic": bc,
            "w_actor": wa, "b_actor": ba, "w_alpha": wal, "b_alpha": bal,
            "w_beta": wbe, "b_beta": bbe}


def reference_bf16(x, p):
    """Pure-JAX reference mirroring the kernel's bf16-operand / f32-accumulate
    math with the composed head (same quantization points as the kernel)."""
    f32, hi = jnp.float32, jax.lax.Precision.HIGHEST
    xb = x.astype(jnp.bfloat16).astype(f32)
    h = jnp.maximum(jnp.dot(xb, p["w1"].astype(f32), precision=hi) + p["b1"], 0.0)
    hb = h.astype(jnp.bfloat16).astype(f32)
    z = jnp.dot(hb, p["w_all"].astype(f32), precision=hi) + p["b_all"]
    head = _softplus(z) + 1.0
    A = p["action_dim"]
    return z[:, 0:1], head[:, 1:1 + A], head[:, 1 + A:1 + 2 * A]


def reference_f32(x, p):
    """Full-f32 reference matching the original PyTorch forward semantics."""
    hi = jax.lax.Precision.HIGHEST
    h = jnp.maximum(jnp.dot(x, p["w1"], precision=hi) + p["b1"], 0.0)
    value = jnp.dot(h, p["w_critic"], precision=hi) + p["b_critic"]
    a = jnp.dot(h, p["w_actor"], precision=hi) + p["b_actor"]
    alpha = jax.nn.softplus(jnp.dot(a, p["w_alpha"], precision=hi) + p["b_alpha"]) + 1.0
    beta = jax.nn.softplus(jnp.dot(a, p["w_beta"], precision=hi) + p["b_beta"]) + 1.0
    return value, alpha, beta


if __name__ == "__main__":
    # BipedalWalker-ish dims: state_dim=(24,), action_dim=(4,).
    B, STATE_DIM, ACTION_DIM = 256, 24, 4

    key = jax.random.PRNGKey(0)
    kx, kp = jax.random.split(key)
    x = jax.random.normal(kx, (B, STATE_DIM), dtype=jnp.float32)
    params = init_params(kp, STATE_DIM, ACTION_DIM)
    packed = pack_params(params, ACTION_DIM)

    value, alpha, beta = bipedal_forward(x, packed)
    jax.block_until_ready((value, alpha, beta))

    assert value.shape == (B, 1)
    assert alpha.shape == (B, ACTION_DIM) and beta.shape == (B, ACTION_DIM)

    # Tight check vs a reference that mirrors the kernel's bf16/f32 math exactly.
    v_ref, a_ref, b_ref = reference_bf16(x, packed)
    assert jnp.allclose(value, v_ref, atol=5e-3, rtol=5e-3)
    assert jnp.allclose(alpha, a_ref, atol=5e-3, rtol=5e-3)
    assert jnp.allclose(beta, b_ref, atol=5e-3, rtol=5e-3)

    # Loose check vs the original full-f32 PyTorch-semantics reference
    # (difference is only bf16 weight quantization + the composed head).
    v32, a32, b32 = reference_f32(x, params)
    assert jnp.allclose(value, v32, atol=5e-2, rtol=5e-2)
    assert jnp.allclose(alpha, a32, atol=5e-2, rtol=5e-2)
    assert jnp.allclose(beta, b32, atol=5e-2, rtol=5e-2)

    assert bool(jnp.all(alpha > 1.0)) and bool(jnp.all(beta > 1.0))
    print("KERNEL_OK")
</pallas_src>

<mosaic_0001>
module attributes {stable_mosaic.version = 11 : i64} {
  func.func @bipedal_kernel(%arg0: i32, %arg1: memref<256x24xf32, #tpu.memory_space<vmem>>, %arg2: memref<24x256xbf16, #tpu.memory_space<vmem>>, %arg3: memref<1x256xf32, #tpu.memory_space<vmem>>, %arg4: memref<256x128xbf16, #tpu.memory_space<vmem>>, %arg5: memref<1x128xf32, #tpu.memory_space<vmem>>, %arg6: memref<256x128xf32, #tpu.memory_space<vmem>>) attributes {dimension_semantics = [#tpu.dimension_semantics<parallel>], iteration_bounds = array<i64: 1>, scalar_prefetch = 0 : i64, scratch_operands = 0 : i64, tpu.core_type = #tpu.core_type<tc>, window_params = [{transform_indices = @transform_0, window_bounds = array<i64: 256, 24>}, {pipeline_mode = #tpu.pipeline_mode<synchronous>, transform_indices = @transform_1, window_bounds = array<i64: 24, 256>}, {pipeline_mode = #tpu.pipeline_mode<synchronous>, transform_indices = @transform_2, window_bounds = array<i64: 1, 256>}, {pipeline_mode = #tpu.pipeline_mode<synchronous>, transform_indices = @transform_3, window_bounds = array<i64: 256, 128>}, {pipeline_mode = #tpu.pipeline_mode<synchronous>, transform_indices = @transform_4, window_bounds = array<i64: 1, 128>}, {transform_indices = @transform_5, window_bounds = array<i64: 256, 128>}]} {
    %c0 = arith.constant 0 : index
    %c0_0 = arith.constant 0 : index
    %0 = vector.load %arg1[%c0, %c0_0] : memref<256x24xf32, #tpu.memory_space<vmem>>, vector<256x24xf32>
    %1 = arith.truncf %0 : vector<256x24xf32> to vector<256x24xbf16>
    %c0_1 = arith.constant 0 : index
    %c0_2 = arith.constant 0 : index
    %2 = vector.load %arg2[%c0_1, %c0_2] : memref<24x256xbf16, #tpu.memory_space<vmem>>, vector<24x256xbf16>
    %cst = arith.constant dense<0.000000e+00> : vector<256x256xf32>
    %3 = tpu.matmul %1, %2, %cst {dimension_numbers = #tpu.dot_dimension_numbers<[1], [0], [0], [1], [0, 0, 1, 1], [], []>} : vector<256x24xbf16>, vector<24x256xbf16>, vector<256x256xf32> -> vector<256x256xf32>
    %c0_3 = arith.constant 0 : index
    %c0_4 = arith.constant 0 : index
    %4 = vector.load %arg3[%c0_3, %c0_4] : memref<1x256xf32, #tpu.memory_space<vmem>>, vector<1x256xf32>
    %5 = vector.broadcast %4 : vector<1x256xf32> to vector<256x256xf32>
    %6 = arith.addf %3, %5 : vector<256x256xf32>
    %cst_5 = arith.constant 0.000000e+00 : f32
    %7 = vector.broadcast %cst_5 : f32 to vector<256x256xf32>
    %8 = arith.maximumf %6, %7 : vector<256x256xf32>
    %9 = arith.truncf %8 : vector<256x256xf32> to vector<256x256xbf16>
    %c0_6 = arith.constant 0 : index
    %c0_7 = arith.constant 0 : index
    %10 = vector.load %arg4[%c0_6, %c0_7] : memref<256x128xbf16, #tpu.memory_space<vmem>>, vector<256x128xbf16>
    %cst_8 = arith.constant dense<0.000000e+00> : vector<256x128xf32>
    %11 = tpu.matmul %9, %10, %cst_8 {dimension_numbers = #tpu.dot_dimension_numbers<[1], [0], [0], [1], [0, 0, 1, 1], [], []>} : vector<256x256xbf16>, vector<256x128xbf16>, vector<256x128xf32> -> vector<256x128xf32>
    %c0_9 = arith.constant 0 : index
    %c0_10 = arith.constant 0 : index
    %12 = vector.load %arg5[%c0_9, %c0_10] : memref<1x128xf32, #tpu.memory_space<vmem>>, vector<1x128xf32>
    %13 = vector.broadcast %12 : vector<1x128xf32> to vector<256x128xf32>
    %14 = arith.addf %11, %13 : vector<256x128xf32>
    %15 = math.absf %14 : vector<256x128xf32>
    %cst_11 = arith.constant 0.000000e+00 : f32
    %16 = vector.broadcast %cst_11 : f32 to vector<256x128xf32>
    %17 = arith.subf %16, %15 : vector<256x128xf32>
    %18 = math.exp %17 : vector<256x128xf32>
    %19 = math.log1p %18 : vector<256x128xf32>
    %cst_12 = arith.constant 0.000000e+00 : f32
    %20 = vector.broadcast %cst_12 : f32 to vector<256x128xf32>
    %21 = arith.maximumf %14, %20 : vector<256x128xf32>
    %22 = arith.addf %19, %21 : vector<256x128xf32>
    %cst_13 = arith.constant 1.000000e+00 : f32
    %23 = vector.broadcast %cst_13 : f32 to vector<256x128xf32>
    %24 = arith.addf %22, %23 : vector<256x128xf32>
    %25 = tpu.iota {dimensions = array<i32: 1>} : vector<256x128xi32>
    %c0_i32 = arith.constant 0 : i32
    %26 = vector.broadcast %c0_i32 : i32 to vector<256x128xi32>
    %27 = arith.cmpi eq, %25, %26 : vector<256x128xi32>
    %28 = arith.select %27, %14, %24 : vector<256x128xi1>, vector<256x128xf32>
    %c0_14 = arith.constant 0 : index
    %c0_15 = arith.constant 0 : index
    %29 = vector.load %arg6[%c0_14, %c0_15] : memref<256x128xf32, #tpu.memory_space<vmem>>, vector<256x128xf32>
    tpu.vector_store %arg6[%c0_14, %c0_15], %28 {strides = array<i32>} : memref<256x128xf32, #tpu.memory_space<vmem>>, vector<256x128xf32>,
    return
  }
  func.func @transform_0(%arg0: i32) -> (i32, i32) {
    %c0_i32 = arith.constant 0 : i32
    %c0_i32_0 = arith.constant 0 : i32
    return %arg0, %c0_i32 : i32, i32
  }
  func.func @transform_1(%arg0: i32) -> (i32, i32) {
    %c0_i32 = arith.constant 0 : i32
    %c0_i32_0 = arith.constant 0 : i32
    %c0_i32_1 = arith.constant 0 : i32
    return %c0_i32, %c0_i32_0 : i32, i32
  }
  func.func @transform_2(%arg0: i32) -> (i32, i32) {
    %c0_i32 = arith.constant 0 : i32
    %c0_i32_0 = arith.constant 0 : i32
    %c0_i32_1 = arith.constant 0 : i32
    return %c0_i32, %c0_i32_0 : i32, i32
  }
  func.func @transform_3(%arg0: i32) -> (i32, i32) {
    %c0_i32 = arith.constant 0 : i32
    %c0_i32_0 = arith.constant 0 : i32
    %c0_i32_1 = arith.constant 0 : i32
    return %c0_i32, %c0_i32_0 : i32, i32
  }
  func.func @transform_4(%arg0: i32) -> (i32, i32) {
    %c0_i32 = arith.constant 0 : i32
    %c0_i32_0 = arith.constant 0 : i32
    %c0_i32_1 = arith.constant 0 : i32
    return %c0_i32, %c0_i32_0 : i32, i32
  }
  func.func @transform_5(%arg0: i32) -> (i32, i32) {
    %c0_i32 = arith.constant 0 : i32
    %c0_i32_0 = arith.constant 0 : i32
    return %arg0, %c0_i32 : i32, i32
  }
}

</mosaic_0001>

<llo_original>
// kernel: tpu_custom_call.1
$region0: #{tpu_custom_call.1}
  #allocation0 [shape = 'u32[]', space=smem, size = 0x4, offset = 0x4, fixed_abs, tag = 'smem constant byte address 0x4 - core index']
  #allocation1 [shape = 'u32[72,128]{1,0:T(1,128)}', space=vmem, size = 0x9000, scoped, tag = 'internal scratch']
  %s0 = inlined_call_operand.vmem [shape: f32[256,24], index: 0, kind: input, shape index: {}]
  %s1 = inlined_call_operand.vmem [shape: bf16[24,256], index: 1, kind: input, shape index: {}]
  %s2 = inlined_call_operand.vmem [shape: f32[1,256], index: 2, kind: input, shape index: {}]
  %s3 = inlined_call_operand.vmem [shape: bf16[256,128], index: 3, kind: input, shape index: {}]
  %s4 = inlined_call_operand.vmem [shape: f32[1,128], index: 4, kind: input, shape index: {}]
  %s5 = inlined_call_operand.hbm [shape: f32[256,128], index: 5, kind: output, shape index: {}]
  %s6 = sld [smem:[#allocation0]]
  $region30: #{tpu_custom_call.1} parent=0
    _
  %s8 = ssub.s32 1, %s6
  %s9 = scalar_select 0, %s8, %s6
  $region1: #{tpu_custom_call.1} parent=0
    #allocation2 [shape = 'u8[131072]{0}', space=vmem, size = 0x20000, scoped, tag = 'output window, operand 0, single buffered']
    #allocation3 [shape = 's32[1]{0}', space=sflag, size = 0x4, scoped, tag = 'scoped memory for tpu_custom_call.1']
    %10 = vsyncpa [#allocation3], 0
    // Predicated region
    $region2: #{tpu_custom_call.1} parent=1 // pred_check
      _
    $region3: #{tpu_custom_call.1} parent=1 // pred_check_branch
      %12 = sbr.rel (0) target = $region5
    $region4: #{tpu_custom_call.1} parent=1 // pred_region
      _
    $region5: #{tpu_custom_call.1} parent=1 // pred_fallthru
      _
    // Predicated region
    $region6: #{tpu_custom_call.1} parent=1 // pred_check
      _
    $region7: #{tpu_custom_call.1} parent=1 // pred_check_branch
      %14 = sbr.rel (0) target = $region9
    $region8: #{tpu_custom_call.1} parent=1 // pred_region
      _
    $region9: #{tpu_custom_call.1} parent=1 // pred_fallthru
      _
    // Predicated region
    $region10: #{tpu_custom_call.1} parent=1 // pred_check
      _
    $region11: #{tpu_custom_call.1} parent=1 // pred_check_branch
      %16 = sbr.rel (0) target = $region13
    $region12: #{tpu_custom_call.1} parent=1 // pred_region
      _
    $region13: #{tpu_custom_call.1} parent=1 // pred_fallthru
      _
    // Predicated region
    $region14: #{tpu_custom_call.1} parent=1 // pred_check
      _
    $region15: #{tpu_custom_call.1} parent=1 // pred_check_branch
      %18 = sbr.rel (0) target = $region17
    $region16: #{tpu_custom_call.1} parent=1 // pred_region
      _
    $region17: #{tpu_custom_call.1} parent=1 // pred_fallthru
      _
    // Predicated region
    $region18: #{tpu_custom_call.1} parent=1 // pred_check
      _
    $region19: #{tpu_custom_call.1} parent=1 // pred_check_branch
      %20 = sbr.rel (0) target = $region21
    $region20: #{tpu_custom_call.1} parent=1 // pred_region
      _
    $region21: #{tpu_custom_call.1} parent=1 // pred_fallthru
      _
    %v22 = vld [vmem:[%s0] sm:$0xff]
    %v23 = vld [vmem:[%s0 + $0x8] sm:$0xff]
    %v24 = vld [vmem:[%s0 + $0x10] sm:$0xff]
    %v25 = vld [vmem:[%s0 + $0x18] sm:$0xff]
    %v26 = vld [vmem:[%s0 + $0x20] sm:$0xff]
    %v27 = vld [vmem:[%s0 + $0x28] sm:$0xff]
    %v28 = vld [vmem:[%s0 + $0x30] sm:$0xff]
    %v29 = vld [vmem:[%s0 + $0x38] sm:$0xff]
    %v30 = vld [vmem:[%s0 + $0x40] sm:$0xff]
    %v31 = vld [vmem:[%s0 + $0x48] sm:$0xff]
    %v32 = vld [vmem:[%s0 + $0x50] sm:$0xff]
    %v33 = vld [vmem:[%s0 + $0x58] sm:$0xff]
    %v34 = vld [vmem:[%s0 + $0x60] sm:$0xff]
    %v35 = vld [vmem:[%s0 + $0x68] sm:$0xff]
    %v36 = vld [vmem:[%s0 + $0x70] sm:$0xff]
    %v37 = vld [vmem:[%s0 + $0x78] sm:$0xff]
    %v38 = vld [vmem:[%s0 + $0x80] sm:$0xff]
    %v39 = vld [vmem:[%s0 + $0x88] sm:$0xff]
    %v40 = vld [vmem:[%s0 + $0x90] sm:$0xff]
    %v41 = vld [vmem:[%s0 + $0x98] sm:$0xff]
    %v42 = vld [vmem:[%s0 + $0xa0] sm:$0xff]
    %v43 = vld [vmem:[%s0 + $0xa8] sm:$0xff]
    %v44 = vld [vmem:[%s0 + $0xb0] sm:$0xff]
    %v45 = vld [vmem:[%s0 + $0xb8] sm:$0xff]
    %v46 = vld [vmem:[%s0 + $0xc0] sm:$0xff]
    %v47 = vld [vmem:[%s0 + $0xc8] sm:$0xff]
    %v48 = vld [vmem:[%s0 + $0xd0] sm:$0xff]
    %v49 = vld [vmem:[%s0 + $0xd8] sm:$0xff]
    %v50 = vld [vmem:[%s0 + $0xe0] sm:$0xff]
    %v51 = vld [vmem:[%s0 + $0xe8] sm:$0xff]
    %v52 = vld [vmem:[%s0 + $0xf0] sm:$0xff]
    %v53 = vld [vmem:[%s0 + $0xf8] sm:$0xff]
    %v54 = vpack.c.bf16 %v23, %v22
    %v55 = vpack.c.bf16 %v25, %v24
    %v56 = vpack.c.bf16 %v27, %v26
    %v57 = vpack.c.bf16 %v29, %v28
    %v58 = vpack.c.bf16 %v31, %v30
    %v59 = vpack.c.bf16 %v33, %v32
    %v60 = vpack.c.bf16 %v35, %v34
    %v61 = vpack.c.bf16 %v37, %v36
    %v62 = vpack.c.bf16 %v39, %v38
    %v63 = vpack.c.bf16 %v41, %v40
    %v64 = vpack.c.bf16 %v43, %v42
    %v65 = vpack.c.bf16 %v45, %v44
    %v66 = vpack.c.bf16 %v47, %v46
    %v67 = vpack.c.bf16 %v49, %v48
    %v68 = vpack.c.bf16 %v51, %v50
    %v69 = vpack.c.bf16 %v53, %v52
    %v70 = vld [vmem:[%s1] sm:$0xff]
    %v71 = vld [vmem:[%s1 + $0x8] sm:$0xff]
    %v72 = vld [vmem:[%s1 + $0x10] sm:$0xff]
    %v73 = vld [vmem:[%s2] sm:$0x3]
    %v75 = vperm.slane %v73, 0
    %v76 = vperm.slane %v73, 1
    %v82 = vunpack.c.l.b16 %v70
    %v83 = vunpack.c.h.b16 %v70
    %v84 = vunpack.c.l.b16 %v71
    %v85 = vunpack.c.h.b16 %v71
    %v86 = vunpack.c.l.b16 %v72
    %v87 = vunpack.c.h.b16 %v72
    %v88 = vpack.c.b16 %v84, %v82
    %v89 = vpack.c.b16 %v85, %v83
    %v90 = vpack.c.b16 %v86, %v86
    %v91 = vpack.c.b16 %v87, %v87
    %vm94 = vcmask 195584
    %v96 = vsel %vm94, %v54, 0
    %v99 = vsel %vm94, %v55, 0
    %v102 = vsel %vm94, %v56, 0
    %v105 = vsel %vm94, %v57, 0
    %v108 = vsel %vm94, %v58, 0
    %v111 = vsel %vm94, %v59, 0
    %v114 = vsel %vm94, %v60, 0
    %v117 = vsel %vm94, %v61, 0
    %v120 = vsel %vm94, %v62, 0
    %v123 = vsel %vm94, %v63, 0
    %v126 = vsel %vm94, %v64, 0
    %v129 = vsel %vm94, %v65, 0
    %v132 = vsel %vm94, %v66, 0
    %v135 = vsel %vm94, %v67, 0
    %v138 = vsel %vm94, %v68, 0
    %v141 = vsel %vm94, %v69, 0
    %vm143 = vcmask 1043456
    %v145 = vsel %vm143, %v90, 0
    %v148 = vsel %vm143, %v91, 0
    %150 = vmatpush.bf16.msra.mxu0 0
    %151 = vmatpush.bf16.msra.mxu0 0
    %152 = vmatpush.bf16.msra.mxu0 0
    %153 = vmatpush.bf16.msra.mxu0 0
    %154 = vmatpush.bf16.msra.mxu0 0
    %155 = vmatpush.bf16.msra.mxu0 0
    %156 = vmatpush.bf16.msra.mxu0 %v145
    %157 = vmatpush.bf16.msra.mxu0 %v88
    %158 = vmatmul.bf16.gmra.mxu0 %v96
    %v159 = vpop.f32.mrf.mxu0
    %v160 = vadd.f32 %v75, %v159
    %v161 = vpop.f32.mrf.mxu0
    %v162 = vadd.f32 %v75, %v161
    %163 = vmatmul.bf16.gmra.mxu0 %v99
    %v164 = vpop.f32.mrf.mxu0
    %v165 = vadd.f32 %v75, %v164
    %v166 = vpop.f32.mrf.mxu0
    %v167 = vadd.f32 %v75, %v166
    %168 = vmatmul.bf16.gmra.mxu0 %v102
    %v169 = vpop.f32.mrf.mxu0
    %v170 = vadd.f32 %v75, %v169
    %v171 = vpop.f32.mrf.mxu0
    %v172 = vadd.f32 %v75, %v171
    %173 = vmatmul.bf16.gmra.mxu0 %v105
    %v174 = vpop.f32.mrf.mxu0
    %v175 = vadd.f32 %v75, %v174
    %v176 = vpop.f32.mrf.mxu0
    %v177 = vadd.f32 %v75, %v176
    %178 = vmatmul.bf16.gmra.mxu0 %v108
    %v179 = vpop.f32.mrf.mxu0
    %v180 = vadd.f32 %v75, %v179
    %v181 = vpop.f32.mrf.mxu0
    %v182 = vadd.f32 %v75, %v181
    %183 = vmatmul.bf16.gmra.mxu0 %v111
    %v184 = vpop.f32.mrf.mxu0
    %v185 = vadd.f32 %v75, %v184
    %v186 = vpop.f32.mrf.mxu0
    %v187 = vadd.f32 %v75, %v186
    %188 = vmatmul.bf16.gmra.mxu0 %v114
    %v189 = vpop.f32.mrf.mxu0
    %v190 = vadd.f32 %v75, %v189
    %v191 = vpop.f32.mrf.mxu0
    %v192 = vadd.f32 %v75, %v191
    %193 = vmatmul.bf16.gmra.mxu0 %v117
    %v194 = vpop.f32.mrf.mxu0
    %v195 = vadd.f32 %v75, %v194
    %v196 = vpop.f32.mrf.mxu0
    %v197 = vadd.f32 %v75, %v196
    %198 = vmatmul.bf16.gmra.mxu0 %v120
    %v199 = vpop.f32.mrf.mxu0
    %v200 = vadd.f32 %v75, %v199
    %v201 = vpop.f32.mrf.mxu0
    %v202 = vadd.f32 %v75, %v201
    %203 = vmatmul.bf16.gmra.mxu0 %v123
    %v204 = vpop.f32.mrf.mxu0
    %v205 = vadd.f32 %v75, %v204
    %v206 = vpop.f32.mrf.mxu0
    %v207 = vadd.f32 %v75, %v206
    %208 = vmatmul.bf16.gmra.mxu0 %v126
    %v209 = vpop.f32.mrf.mxu0
    %v210 = vadd.f32 %v75, %v209
    %v211 = vpop.f32.mrf.mxu0
    %v212 = vadd.f32 %v75, %v211
    %213 = vmatmul.bf16.gmra.mxu0 %v129
    %v214 = vpop.f32.mrf.mxu0
    %v215 = vadd.f32 %v75, %v214
    %v216 = vpop.f32.mrf.mxu0
    %v217 = vadd.f32 %v75, %v216
    %218 = vmatmul.bf16.gmra.mxu0 %v132
    %v219 = vpop.f32.mrf.mxu0
    %v220 = vadd.f32 %v75, %v219
    %v221 = vpop.f32.mrf.mxu0
    %v222 = vadd.f32 %v75, %v221
    %223 = vmatmul.bf16.gmra.mxu0 %v135
    %v224 = vpop.f32.mrf.mxu0
    %v225 = vadd.f32 %v75, %v224
    %v226 = vpop.f32.mrf.mxu0
    %v227 = vadd.f32 %v75, %v226
    %228 = vmatmul.bf16.gmra.mxu0 %v138
    %v229 = vpop.f32.mrf.mxu0
    %v230 = vadd.f32 %v75, %v229
    %v231 = vpop.f32.mrf.mxu0
    %v232 = vadd.f32 %v75, %v231
    %233 = vmatmul.bf16.gmra.mxu0 %v141
    %v234 = vpop.f32.mrf.mxu0
    %v235 = vadd.f32 %v75, %v234
    %v236 = vpop.f32.mrf.mxu0
    %v237 = vadd.f32 %v75, %v236
    %238 = vdwg.mxu0
    %239 = vmatpush.bf16.msra.mxu0 0
    %240 = vmatpush.bf16.msra.mxu0 0
    %241 = vmatpush.bf16.msra.mxu0 0
    %242 = vmatpush.bf16.msra.mxu0 0
    %243 = vmatpush.bf16.msra.mxu0 0
    %244 = vmatpush.bf16.msra.mxu0 0
    %245 = vmatpush.bf16.msra.mxu0 %v148
    %246 = vmatpush.bf16.msra.mxu0 %v89
    %247 = vmatmul.bf16.gmra.mxu0 %v96
    %v248 = vpop.f32.mrf.mxu0
    %v249 = vadd.f32 %v76, %v248
    %v250 = vpop.f32.mrf.mxu0
    %v251 = vadd.f32 %v76, %v250
    %252 = vmatmul.bf16.gmra.mxu0 %v99
    %v253 = vpop.f32.mrf.mxu0
    %v254 = vadd.f32 %v76, %v253
    %v255 = vpop.f32.mrf.mxu0
    %v256 = vadd.f32 %v76, %v255
    %257 = vmatmul.bf16.gmra.mxu0 %v102
    %v258 = vpop.f32.mrf.mxu0
    %v259 = vadd.f32 %v76, %v258
    %v260 = vpop.f32.mrf.mxu0
    %v261 = vadd.f32 %v76, %v260
    %262 = vmatmul.bf16.gmra.mxu0 %v105
    %v263 = vpop.f32.mrf.mxu0
    %v264 = vadd.f32 %v76, %v263
    %v265 = vpop.f32.mrf.mxu0
    %v266 = vadd.f32 %v76, %v265
    %267 = vmatmul.bf16.gmra.mxu0 %v108
    %v268 = vpop.f32.mrf.mxu0
    %v269 = vadd.f32 %v76, %v268
    %v270 = vpop.f32.mrf.mxu0
    %v271 = vadd.f32 %v76, %v270
    %272 = vmatmul.bf16.gmra.mxu0 %v111
    %v273 = vpop.f32.mrf.mxu0
    %v274 = vadd.f32 %v76, %v273
    %v275 = vpop.f32.mrf.mxu0
    %v276 = vadd.f32 %v76, %v275
    %277 = vmatmul.bf16.gmra.mxu0 %v114
    %v278 = vpop.f32.mrf.mxu0
    %v279 = vadd.f32 %v76, %v278
    %v280 = vpop.f32.mrf.mxu0
    %v281 = vadd.f32 %v76, %v280
    %282 = vmatmul.bf16.gmra.mxu0 %v117
    %v283 = vpop.f32.mrf.mxu0
    %v284 = vadd.f32 %v76, %v283
    %v285 = vpop.f32.mrf.mxu0
    %v286 = vadd.f32 %v76, %v285
    %287 = vmatmul.bf16.gmra.mxu0 %v120
    %v288 = vpop.f32.mrf.mxu0
    %v289 = vadd.f32 %v76, %v288
    %v290 = vpop.f32.mrf.mxu0
    %v291 = vadd.f32 %v76, %v290
    %292 = vmatmul.bf16.gmra.mxu0 %v123
    %v293 = vpop.f32.mrf.mxu0
    %v294 = vadd.f32 %v76, %v293
    %v295 = vpop.f32.mrf.mxu0
    %v296 = vadd.f32 %v76, %v295
    %297 = vmatmul.bf16.gmra.mxu0 %v126
    %v298 = vpop.f32.mrf.mxu0
    %v299 = vadd.f32 %v76, %v298
    %v300 = vpop.f32.mrf.mxu0
    %v301 = vadd.f32 %v76, %v300
    %302 = vmatmul.bf16.gmra.mxu0 %v129
    %v303 = vpop.f32.mrf.mxu0
    %v304 = vadd.f32 %v76, %v303
    %v305 = vpop.f32.mrf.mxu0
    %v306 = vadd.f32 %v76, %v305
    %307 = vmatmul.bf16.gmra.mxu0 %v132
    %v308 = vpop.f32.mrf.mxu0
    %v309 = vadd.f32 %v76, %v308
    %v310 = vpop.f32.mrf.mxu0
    %v311 = vadd.f32 %v76, %v310
    %312 = vmatmul.bf16.gmra.mxu0 %v135
    %v313 = vpop.f32.mrf.mxu0
    %v314 = vadd.f32 %v76, %v313
    %v315 = vpop.f32.mrf.mxu0
    %v316 = vadd.f32 %v76, %v315
    %317 = vmatmul.bf16.gmra.mxu0 %v138
    %v318 = vpop.f32.mrf.mxu0
    %v319 = vadd.f32 %v76, %v318
    %v320 = vpop.f32.mrf.mxu0
    %v321 = vadd.f32 %v76, %v320
    %322 = vmatmul.bf16.gmra.mxu0 %v141
    %v323 = vpop.f32.mrf.mxu0
    %v324 = vadd.f32 %v76, %v323
    %v325 = vpop.f32.mrf.mxu0
    %v326 = vadd.f32 %v76, %v325
    %327 = vdwg.mxu0
    %v328 = vmax.f32 %v160, 0.0
    %v329 = vmax.f32 %v249, 0.0
    %v330 = vmax.f32 %v162, 0.0
    %v331 = vmax.f32 %v251, 0.0
    %v332 = vmax.f32 %v165, 0.0
    %v333 = vmax.f32 %v254, 0.0
    %v334 = vmax.f32 %v167, 0.0
    %v335 = vmax.f32 %v256, 0.0
    %v336 = vmax.f32 %v170, 0.0
    %v337 = vmax.f32 %v259, 0.0
    %v338 = vmax.f32 %v172, 0.0
    %v339 = vmax.f32 %v261, 0.0
    %v340 = vmax.f32 %v175, 0.0
    %v341 = vmax.f32 %v264, 0.0
    %v342 = vmax.f32 %v177, 0.0
    %v343 = vmax.f32 %v266, 0.0
    %v344 = vmax.f32 %v180, 0.0
    %v345 = vmax.f32 %v269, 0.0
    %v346 = vmax.f32 %v182, 0.0
    %v347 = vmax.f32 %v271, 0.0
    %v348 = vmax.f32 %v185, 0.0
    %v349 = vmax.f32 %v274, 0.0
    %v350 = vmax.f32 %v187, 0.0
    %v351 = vmax.f32 %v276, 0.0
    %v352 = vmax.f32 %v190, 0.0
    %v353 = vmax.f32 %v279, 0.0
    %v354 = vmax.f32 %v192, 0.0
    %v355 = vmax.f32 %v281, 0.0
    %v356 = vmax.f32 %v195, 0.0
    %v357 = vmax.f32 %v284, 0.0
    %v358 = vmax.f32 %v197, 0.0
    %v359 = vmax.f32 %v286, 0.0
    %v360 = vmax.f32 %v200, 0.0
    %v361 = vmax.f32 %v289, 0.0
    %v362 = vmax.f32 %v202, 0.0
    %v363 = vmax.f32 %v291, 0.0
    %v364 = vmax.f32 %v205, 0.0
    %v365 = vmax.f32 %v294, 0.0
    %v366 = vmax.f32 %v207, 0.0
    %v367 = vmax.f32 %v296, 0.0
    %v368 = vmax.f32 %v210, 0.0
    %v369 = vmax.f32 %v299, 0.0
    %v370 = vmax.f32 %v212, 0.0
    %v371 = vmax.f32 %v301, 0.0
    %v372 = vmax.f32 %v215, 0.0
    %v373 = vmax.f32 %v304, 0.0
    %v374 = vmax.f32 %v217, 0.0
    %v375 = vmax.f32 %v306, 0.0
    %v376 = vmax.f32 %v220, 0.0
    %v377 = vmax.f32 %v309, 0.0
    %v378 = vmax.f32 %v222, 0.0
    %v379 = vmax.f32 %v311, 0.0
    %v380 = vmax.f32 %v225, 0.0
    %v381 = vmax.f32 %v314, 0.0
    %v382 = vmax.f32 %v227, 0.0
    %v383 = vmax.f32 %v316, 0.0
    %v384 = vmax.f32 %v230, 0.0
    %v385 = vmax.f32 %v319, 0.0
    %v386 = vmax.f32 %v232, 0.0
    %v387 = vmax.f32 %v321, 0.0
    %v388 = vmax.f32 %v235, 0.0
    %v389 = vmax.f32 %v324, 0.0
    %v390 = vmax.f32 %v237, 0.0
    %v391 = vmax.f32 %v326, 0.0
    %v392 = vpack.c.bf16 %v330, %v328
    %v393 = vpack.c.bf16 %v331, %v329
    %v394 = vpack.c.bf16 %v334, %v332
    %v395 = vpack.c.bf16 %v335, %v333
    %v396 = vpack.c.bf16 %v338, %v336
    %v397 = vpack.c.bf16 %v339, %v337
    %v398 = vpack.c.bf16 %v342, %v340
    %v399 = vpack.c.bf16 %v343, %v341
    %v400 = vpack.c.bf16 %v346, %v344
    %v401 = vpack.c.bf16 %v347, %v345
    %v402 = vpack.c.bf16 %v350, %v348
    %v403 = vpack.c.bf16 %v351, %v349
    %v404 = vpack.c.bf16 %v354, %v352
    %v405 = vpack.c.bf16 %v355, %v353
    %v406 = vpack.c.bf16 %v358, %v356
    %v407 = vpack.c.bf16 %v359, %v357
    %v408 = vpack.c.bf16 %v362, %v360
    %v409 = vpack.c.bf16 %v363, %v361
    %v410 = vpack.c.bf16 %v366, %v364
    %v411 = vpack.c.bf16 %v367, %v365
    %v412 = vpack.c.bf16 %v370, %v368
    %v413 = vpack.c.bf16 %v371, %v369
    %v414 = vpack.c.bf16 %v374, %v372
    %v415 = vpack.c.bf16 %v375, %v373
    %v416 = vpack.c.bf16 %v378, %v376
    %v417 = vpack.c.bf16 %v379, %v377
    %v418 = vpack.c.bf16 %v382, %v380
    %v419 = vpack.c.bf16 %v383, %v381
    %v420 = vpack.c.bf16 %v386, %v384
    %v421 = vpack.c.bf16 %v387, %v385
    %v422 = vpack.c.bf16 %v390, %v388
    %v423 = vpack.c.bf16 %v391, %v389
    %v424 = vld [vmem:[%s3] sm:$0xf]
    %v425 = vld [vmem:[%s3 + $0x4] sm:$0xf]
    %v426 = vld [vmem:[%s3 + $0x8] sm:$0xf]
    %v427 = vld [vmem:[%s3 + $0xc] sm:$0xf]
    %v428 = vld [vmem:[%s3 + $0x10] sm:$0xf]
    %v429 = vld [vmem:[%s3 + $0x14] sm:$0xf]
    %v430 = vld [vmem:[%s3 + $0x18] sm:$0xf]
    %v431 = vld [vmem:[%s3 + $0x1c] sm:$0xf]
    %v432 = vld [vmem:[%s3 + $0x20] sm:$0xf]
    %v433 = vld [vmem:[%s3 + $0x24] sm:$0xf]
    %v434 = vld [vmem:[%s3 + $0x28] sm:$0xf]
    %v435 = vld [vmem:[%s3 + $0x2c] sm:$0xf]
    %v436 = vld [vmem:[%s3 + $0x30] sm:$0xf]
    %v437 = vld [vmem:[%s3 + $0x34] sm:$0xf]
    %v438 = vld [vmem:[%s3 + $0x38] sm:$0xf]
    %v439 = vld [vmem:[%s3 + $0x3c] sm:$0xf]
    %v440 = vld [vmem:[%s3 + $0x40] sm:$0xf]
    %v441 = vld [vmem:[%s3 + $0x44] sm:$0xf]
    %v442 = vld [vmem:[%s3 + $0x48] sm:$0xf]
    %v443 = vld [vmem:[%s3 + $0x4c] sm:$0xf]
    %v444 = vld [vmem:[%s3 + $0x50] sm:$0xf]
    %v445 = vld [vmem:[%s3 + $0x54] sm:$0xf]
    %v446 = vld [vmem:[%s3 + $0x58] sm:$0xf]
    %v447 = vld [vmem:[%s3 + $0x5c] sm:$0xf]
    %v448 = vld [vmem:[%s3 + $0x60] sm:$0xf]
    %v449 = vld [vmem:[%s3 + $0x64] sm:$0xf]
    %v450 = vld [vmem:[%s3 + $0x68] sm:$0xf]
    %v451 = vld [vmem:[%s3 + $0x6c] sm:$0xf]
    %v452 = vld [vmem:[%s3 + $0x70] sm:$0xf]
    %v453 = vld [vmem:[%s3 + $0x74] sm:$0xf]
    %v454 = vld [vmem:[%s3 + $0x78] sm:$0xf]
    %v455 = vld [vmem:[%s3 + $0x7c] sm:$0xf]
    %v456 = vld [vmem:[%s4] sm:$0x1]
    %v458 = vperm.slane %v456, 0
    %v492 = vunpack.c.l.b16 %v424
    %v493 = vunpack.c.l.b16 %v425
    %v494 = vunpack.c.l.b16 %v426
    %v495 = vunpack.c.l.b16 %v427
    %v496 = vunpack.c.l.b16 %v428
    %v497 = vunpack.c.l.b16 %v429
    %v498 = vunpack.c.l.b16 %v430
    %v499 = vunpack.c.l.b16 %v431
    %v500 = vunpack.c.l.b16 %v432
    %v501 = vunpack.c.l.b16 %v433
    %v502 = vunpack.c.l.b16 %v434
    %v503 = vunpack.c.l.b16 %v435
    %v504 = vunpack.c.l.b16 %v436
    %v505 = vunpack.c.l.b16 %v437
    %v506 = vunpack.c.l.b16 %v438
    %v507 = vunpack.c.l.b16 %v439
    %v508 = vunpack.c.l.b16 %v440
    %v509 = vunpack.c.l.b16 %v441
    %v510 = vunpack.c.l.b16 %v442
    %v511 = vunpack.c.l.b16 %v443
    %v512 = vunpack.c.l.b16 %v444
    %v513 = vunpack.c.l.b16 %v445
    %v514 = vunpack.c.l.b16 %v446
    %v515 = vunpack.c.l.b16 %v447
    %v516 = vunpack.c.l.b16 %v448
    %v517 = vunpack.c.l.b16 %v449
    %v518 = vunpack.c.l.b16 %v450
    %v519 = vunpack.c.l.b16 %v451
    %v520 = vunpack.c.l.b16 %v452
    %v521 = vunpack.c.l.b16 %v453
    %v522 = vunpack.c.l.b16 %v454
    %v523 = vunpack.c.l.b16 %v455
    %v524 = vpack.c.b16 %v493, %v492
    %v525 = vpack.c.b16 %v495, %v494
    %v526 = vpack.c.b16 %v497, %v496
    %v527 = vpack.c.b16 %v499, %v498
    %v528 = vpack.c.b16 %v501, %v500
    %v529 = vpack.c.b16 %v503, %v502
    %v530 = vpack.c.b16 %v505, %v504
    %v531 = vpack.c.b16 %v507, %v506
    %v532 = vpack.c.b16 %v509, %v508
    %v533 = vpack.c.b16 %v511, %v510
    %v534 = vpack.c.b16 %v513, %v512
    %v535 = vpack.c.b16 %v515, %v514
    %v536 = vpack.c.b16 %v517, %v516
    %v537 = vpack.c.b16 %v519, %v518
    %v538 = vpack.c.b16 %v521, %v520
    %v539 = vpack.c.b16 %v523, %v522
    %556 = vmatpush.bf16.msra.mxu0 %v531
    %557 = vmatpush.bf16.msra.mxu0 %v530
    %558 = vmatpush.bf16.msra.mxu0 %v529
    %559 = vmatpush.bf16.msra.mxu0 %v528
    %560 = vmatpush.bf16.msra.mxu0 %v527
    %561 = vmatpush.bf16.msra.mxu0 %v526
    %562 = vmatpush.bf16.msra.mxu0 %v525
    %563 = vmatpush.bf16.msra.mxu0 %v524
    %564 = vmatmul.bf16.gmra.mxu0 %v392
    %v565 = vpop.f32.mrf.mxu0
    %v566 = vadd.f32 %v458, %v565
    %v567 = vpop.f32.mrf.mxu0
    %v568 = vadd.f32 %v458, %v567
    %569 = vmatmul.bf16.gmra.mxu0 %v394
    %v570 = vpop.f32.mrf.mxu0
    %v571 = vadd.f32 %v458, %v570
    %v572 = vpop.f32.mrf.mxu0
    %v573 = vadd.f32 %v458, %v572
    %574 = vmatmul.bf16.gmra.mxu0 %v396
    %v575 = vpop.f32.mrf.mxu0
    %v576 = vadd.f32 %v458, %v575
    %v577 = vpop.f32.mrf.mxu0
    %v578 = vadd.f32 %v458, %v577
    %579 = vmatmul.bf16.gmra.mxu0 %v398
    %v580 = vpop.f32.mrf.mxu0
    %v581 = vadd.f32 %v458, %v580
    %v582 = vpop.f32.mrf.mxu0
    %v583 = vadd.f32 %v458, %v582
    %584 = vmatmul.bf16.gmra.mxu0 %v400
    %v585 = vpop.f32.mrf.mxu0
    %v586 = vadd.f32 %v458, %v585
    %v587 = vpop.f32.mrf.mxu0
    %v588 = vadd.f32 %v458, %v587
    %589 = vmatmul.bf16.gmra.mxu0 %v402
    %v590 = vpop.f32.mrf.mxu0
    %v591 = vadd.f32 %v458, %v590
    %v592 = vpop.f32.mrf.mxu0
    %v593 = vadd.f32 %v458, %v592
    %594 = vmatmul.bf16.gmra.mxu0 %v404
    %v595 = vpop.f32.mrf.mxu0
    %v596 = vadd.f32 %v458, %v595
    %v597 = vpop.f32.mrf.mxu0
    %v598 = vadd.f32 %v458, %v597
    %599 = vmatmul.bf16.gmra.mxu0 %v406
    %v600 = vpop.f32.mrf.mxu0
    %v601 = vadd.f32 %v458, %v600
    %v602 = vpop.f32.mrf.mxu0
    %v603 = vadd.f32 %v458, %v602
    %604 = vmatmul.bf16.gmra.mxu0 %v408
    %v605 = vpop.f32.mrf.mxu0
    %v606 = vadd.f32 %v458, %v605
    %v607 = vpop.f32.mrf.mxu0
    %v608 = vadd.f32 %v458, %v607
    %609 = vmatmul.bf16.gmra.mxu0 %v410
    %v610 = vpop.f32.mrf.mxu0
    %v611 = vadd.f32 %v458, %v610
    %v612 = vpop.f32.mrf.mxu0
    %v613 = vadd.f32 %v458, %v612
    %614 = vmatmul.bf16.gmra.mxu0 %v412
    %v615 = vpop.f32.mrf.mxu0
    %v616 = vadd.f32 %v458, %v615
    %v617 = vpop.f32.mrf.mxu0
    %v618 = vadd.f32 %v458, %v617
    %619 = vmatmul.bf16.gmra.mxu0 %v414
    %v620 = vpop.f32.mrf.mxu0
    %v621 = vadd.f32 %v458, %v620
    %v622 = vpop.f32.mrf.mxu0
    %v623 = vadd.f32 %v458, %v622
    %624 = vmatmul.bf16.gmra.mxu0 %v416
    %v625 = vpop.f32.mrf.mxu0
    %v626 = vadd.f32 %v458, %v625
    %v627 = vpop.f32.mrf.mxu0
    %v628 = vadd.f32 %v458, %v627
    %629 = vmatmul.bf16.gmra.mxu0 %v418
    %v630 = vpop.f32.mrf.mxu0
    %v631 = vadd.f32 %v458, %v630
    %v632 = vpop.f32.mrf.mxu0
    %v633 = vadd.f32 %v458, %v632
    %634 = vmatmul.bf16.gmra.mxu0 %v420
    %v635 = vpop.f32.mrf.mxu0
    %v636 = vadd.f32 %v458, %v635
    %v637 = vpop.f32.mrf.mxu0
    %v638 = vadd.f32 %v458, %v637
    %639 = vmatmul.bf16.gmra.mxu0 %v422
    %v640 = vpop.f32.mrf.mxu0
    %v641 = vadd.f32 %v458, %v640
    %v642 = vpop.f32.mrf.mxu0
    %v643 = vadd.f32 %v458, %v642
    %644 = vdwg.mxu0
    %645 = vmatpush.bf16.msra.mxu0 %v539
    %646 = vmatpush.bf16.msra.mxu0 %v538
    %647 = vmatpush.bf16.msra.mxu0 %v537
    %648 = vmatpush.bf16.msra.mxu0 %v536
    %649 = vmatpush.bf16.msra.mxu0 %v535
    %650 = vmatpush.bf16.msra.mxu0 %v534
    %651 = vmatpush.bf16.msra.mxu0 %v533
    %652 = vmatpush.bf16.msra.mxu0 %v532
    %653 = vmatmul.bf16.gmra.mxu0 %v393
    %v654 = vpop.f32.mrf.mxu0
    %v655 = vadd.f32 %v566, %v654
    %v656 = vpop.f32.mrf.mxu0
    %v657 = vadd.f32 %v568, %v656
    %658 = vmatmul.bf16.gmra.mxu0 %v395
    %v659 = vpop.f32.mrf.mxu0
    %v660 = vadd.f32 %v571, %v659
    %v661 = vpop.f32.mrf.mxu0
    %v662 = vadd.f32 %v573, %v661
    %663 = vmatmul.bf16.gmra.mxu0 %v397
    %v664 = vpop.f32.mrf.mxu0
    %v665 = vadd.f32 %v576, %v664
    %v666 = vpop.f32.mrf.mxu0
    %v667 = vadd.f32 %v578, %v666
    %668 = vmatmul.bf16.gmra.mxu0 %v399
    %v669 = vpop.f32.mrf.mxu0
    %v670 = vadd.f32 %v581, %v669
    %v671 = vpop.f32.mrf.mxu0
    %v672 = vadd.f32 %v583, %v671
    %673 = vmatmul.bf16.gmra.mxu0 %v401
    %v674 = vpop.f32.mrf.mxu0
    %v675 = vadd.f32 %v586, %v674
    %v676 = vpop.f32.mrf.mxu0
    %v677 = vadd.f32 %v588, %v676
    %678 = vmatmul.bf16.gmra.mxu0 %v403
    %v679 = vpop.f32.mrf.mxu0
    %v680 = vadd.f32 %v591, %v679
    %v681 = vpop.f32.mrf.mxu0
    %v682 = vadd.f32 %v593, %v681
    %683 = vmatmul.bf16.gmra.mxu0 %v405
    %v684 = vpop.f32.mrf.mxu0
    %v685 = vadd.f32 %v596, %v684
    %v686 = vpop.f32.mrf.mxu0
    %v687 = vadd.f32 %v598, %v686
    %688 = vmatmul.bf16.gmra.mxu0 %v407
    %v689 = vpop.f32.mrf.mxu0
    %v690 = vadd.f32 %v601, %v689
    %v691 = vpop.f32.mrf.mxu0
    %v692 = vadd.f32 %v603, %v691
    %693 = vmatmul.bf16.gmra.mxu0 %v409
    %v694 = vpop.f32.mrf.mxu0
    %v695 = vadd.f32 %v606, %v694
    %v696 = vpop.f32.mrf.mxu0
    %v697 = vadd.f32 %v608, %v696
    %698 = vmatmul.bf16.gmra.mxu0 %v411
    %v699 = vpop.f32.mrf.mxu0
    %v700 = vadd.f32 %v611, %v699
    %v701 = vpop.f32.mrf.mxu0
    %v702 = vadd.f32 %v613, %v701
    %703 = vmatmul.bf16.gmra.mxu0 %v413
    %v704 = vpop.f32.mrf.mxu0
    %v705 = vadd.f32 %v616, %v704
    %v706 = vpop.f32.mrf.mxu0
    %v707 = vadd.f32 %v618, %v706
    %708 = vmatmul.bf16.gmra.mxu0 %v415
    %v709 = vpop.f32.mrf.mxu0
    %v710 = vadd.f32 %v621, %v709
    %v711 = vpop.f32.mrf.mxu0
    %v712 = vadd.f32 %v623, %v711
    %713 = vmatmul.bf16.gmra.mxu0 %v417
    %v714 = vpop.f32.mrf.mxu0
    %v715 = vadd.f32 %v626, %v714
    %v716 = vpop.f32.mrf.mxu0
    %v717 = vadd.f32 %v628, %v716
    %718 = vmatmul.bf16.gmra.mxu0 %v419
    %v719 = vpop.f32.mrf.mxu0
    %v720 = vadd.f32 %v631, %v719
    %v721 = vpop.f32.mrf.mxu0
    %v722 = vadd.f32 %v633, %v721
    %723 = vmatmul.bf16.gmra.mxu0 %v421
    %v724 = vpop.f32.mrf.mxu0
    %v725 = vadd.f32 %v636, %v724
    %v726 = vpop.f32.mrf.mxu0
    %v727 = vadd.f32 %v638, %v726
    %728 = vmatmul.bf16.gmra.mxu0 %v423
    %v729 = vpop.f32.mrf.mxu0
    %v730 = vadd.f32 %v641, %v729
    %v731 = vpop.f32.mrf.mxu0
    %v732 = vadd.f32 %v643, %v731
    %733 = vdwg.mxu0
    %v734 = vand.u32 2147483647, %v655
    %v735 = vand.u32 2147483647, %v657
    %v736 = vand.u32 2147483647, %v660
    %v737 = vand.u32 2147483647, %v662
    %v738 = vand.u32 2147483647, %v665
    %v739 = vand.u32 2147483647, %v667
    %v740 = vand.u32 2147483647, %v670
    %v741 = vand.u32 2147483647, %v672
    %v742 = vand.u32 2147483647, %v675
    %v743 = vand.u32 2147483647, %v677
    %v744 = vand.u32 2147483647, %v680
    %v745 = vand.u32 2147483647, %v682
    %v746 = vand.u32 2147483647, %v685
    %v747 = vand.u32 2147483647, %v687
    %v748 = vand.u32 2147483647, %v690
    %v749 = vand.u32 2147483647, %v692
    %v750 = vand.u32 2147483647, %v695
    %v751 = vand.u32 2147483647, %v697
    %v752 = vand.u32 2147483647, %v700
    %v753 = vand.u32 2147483647, %v702
    %v754 = vand.u32 2147483647, %v705
    %v755 = vand.u32 2147483647, %v707
    %v756 = vand.u32 2147483647, %v710
    %v757 = vand.u32 2147483647, %v712
    %v758 = vand.u32 2147483647, %v715
    %v759 = vand.u32 2147483647, %v717
    %v760 = vand.u32 2147483647, %v720
    %v761 = vand.u32 2147483647, %v722
    %v762 = vand.u32 2147483647, %v725
    %v763 = vand.u32 2147483647, %v727
    %v764 = vand.u32 2147483647, %v730
    %v765 = vand.u32 2147483647, %v732
    %v766 = vsub.f32 0.0, %v734
    %v767 = vsub.f32 0.0, %v735
    %v768 = vsub.f32 0.0, %v736
    %v769 = vsub.f32 0.0, %v737
    %v770 = vsub.f32 0.0, %v738
    %v771 = vsub.f32 0.0, %v739
    %v772 = vsub.f32 0.0, %v740
    %v773 = vsub.f32 0.0, %v741
    %v774 = vsub.f32 0.0, %v742
    %v775 = vsub.f32 0.0, %v743
    %v776 = vsub.f32 0.0, %v744
    %v777 = vsub.f32 0.0, %v745
    %v778 = vsub.f32 0.0, %v746
    %v779 = vsub.f32 0.0, %v747
    %v780 = vsub.f32 0.0, %v748
    %v781 = vsub.f32 0.0, %v749
    %v782 = vsub.f32 0.0, %v750
    %v783 = vsub.f32 0.0, %v751
    %v784 = vsub.f32 0.0, %v752
    %v785 = vsub.f32 0.0, %v753
    %v786 = vsub.f32 0.0, %v754
    %v787 = vsub.f32 0.0, %v755
    %v788 = vsub.f32 0.0, %v756
    %v789 = vsub.f32 0.0, %v757
    %v790 = vsub.f32 0.0, %v758
    %v791 = vsub.f32 0.0, %v759
    %v792 = vsub.f32 0.0, %v760
    %v793 = vsub.f32 0.0, %v761
    %v794 = vsub.f32 0.0, %v762
    %v795 = vsub.f32 0.0, %v763
    %v796 = vsub.f32 0.0, %v764
    %v797 = vsub.f32 0.0, %v765
    %v798 = vmul.f32 %v766, 1.442695
    %v799 = vpow.pop %v798
    %v800 = vmul.f32 %v767, 1.442695
    %v801 = vpow.pop %v800
    %v802 = vmul.f32 %v768, 1.442695
    %v803 = vpow.pop %v802
    %v804 = vmul.f32 %v769, 1.442695
    %v805 = vpow.pop %v804
    %v806 = vmul.f32 %v770, 1.442695
    %v807 = vpow.pop %v806
    %v808 = vmul.f32 %v771, 1.442695
    %v809 = vpow.pop %v808
    %v810 = vmul.f32 %v772, 1.442695
    %v811 = vpow.pop %v810
    %v812 = vmul.f32 %v773, 1.442695
    %v813 = vpow.pop %v812
    %v814 = vmul.f32 %v774, 1.442695
    %v815 = vpow.pop %v814
    %v816 = vmul.f32 %v775, 1.442695
    %v817 = vpow.pop %v816
    %v818 = vmul.f32 %v776, 1.442695
    %v819 = vpow.pop %v818
    %v820 = vmul.f32 %v777, 1.442695
    %v821 = vpow.pop %v820
    %v822 = vmul.f32 %v778, 1.442695
    %v823 = vpow.pop %v822
    %v824 = vmul.f32 %v779, 1.442695
    %v825 = vpow.pop %v824
    %v826 = vmul.f32 %v780, 1.442695
    %v827 = vpow.pop %v826
    %v828 = vmul.f32 %v781, 1.442695
    %v829 = vpow.pop %v828
    %v830 = vmul.f32 %v782, 1.442695
    %v831 = vpow.pop %v830
    %v832 = vmul.f32 %v783, 1.442695
    %v833 = vpow.pop %v832
    %v834 = vmul.f32 %v784, 1.442695
    %v835 = vpow.pop %v834
    %v836 = vmul.f32 %v785, 1.442695
    %v837 = vpow.pop %v836
    %v838 = vmul.f32 %v786, 1.442695
    %v839 = vpow.pop %v838
    %v840 = vmul.f32 %v787, 1.442695
    %v841 = vpow.pop %v840
    %v842 = vmul.f32 %v788, 1.442695
    %v843 = vpow.pop %v842
    %v844 = vmul.f32 %v789, 1.442695
    %v845 = vpow.pop %v844
    %v846 = vmul.f32 %v790, 1.442695
    %v847 = vpow.pop %v846
    %v848 = vmul.f32 %v791, 1.442695
    %v849 = vpow.pop %v848
    %v850 = vmul.f32 %v792, 1.442695
    %v851 = vpow.pop %v850
    %v852 = vmul.f32 %v793, 1.442695
    %v853 = vpow.pop %v852
    %v854 = vmul.f32 %v794, 1.442695
    %v855 = vpow.pop %v854
    %v856 = vmul.f32 %v795, 1.442695
    %v857 = vpow.pop %v856
    %v858 = vmul.f32 %v796, 1.442695
    %v859 = vpow.pop %v858
    %v860 = vmul.f32 %v797, 1.442695
    %v861 = vpow.pop %v860
    %v862 = vadd.f32 %v799, 1.0
    %v863 = vlog2.pop %v862
    %v864 = vmul.f32 %v863, 0.6931472
    %v865 = vmul.f32 -0.5, %v799
    %v866 = vadd.f32 %v865, 1.0
    %v867 = vmul.f32 %v866, %v799
    %v868 = vand.u32 2147483647, %v799
    %vm869 = vcmp.lt.f32.partialorder %v868, 0.0004427343
    %v870 = vsel %vm869, %v867, %v864
    %v871 = vadd.f32 %v801, 1.0
    %v872 = vlog2.pop %v871
    %v873 = vmul.f32 %v872, 0.6931472
    %v874 = vmul.f32 -0.5, %v801
    %v875 = vadd.f32 %v874, 1.0
    %v876 = vmul.f32 %v875, %v801
    %v877 = vand.u32 2147483647, %v801
    %vm878 = vcmp.lt.f32.partialorder %v877, 0.0004427343
    %v879 = vsel %vm878, %v876, %v873
    %v880 = vadd.f32 %v803, 1.0
    %v881 = vlog2.pop %v880
    %v882 = vmul.f32 %v881, 0.6931472
    %v883 = vmul.f32 -0.5, %v803
    %v884 = vadd.f32 %v883, 1.0
    %v885 = vmul.f32 %v884, %v803
    %v886 = vand.u32 2147483647, %v803
    %vm887 = vcmp.lt.f32.partialorder %v886, 0.0004427343
    %v888 = vsel %vm887, %v885, %v882
    %v889 = vadd.f32 %v805, 1.0
    %v890 = vlog2.pop %v889
    %v891 = vmul.f32 %v890, 0.6931472
    %v892 = vmul.f32 -0.5, %v805
    %v893 = vadd.f32 %v892, 1.0
    %v894 = vmul.f32 %v893, %v805
    %v895 = vand.u32 2147483647, %v805
    %vm896 = vcmp.lt.f32.partialorder %v895, 0.0004427343
    %v897 = vsel %vm896, %v894, %v891
    %v898 = vadd.f32 %v807, 1.0
    %v899 = vlog2.pop %v898
    %v900 = vmul.f32 %v899, 0.6931472
    %v901 = vmul.f32 -0.5, %v807
    %v902 = vadd.f32 %v901, 1.0
    %v903 = vmul.f32 %v902, %v807
    %v904 = vand.u32 2147483647, %v807
    %vm905 = vcmp.lt.f32.partialorder %v904, 0.0004427343
    %v906 = vsel %vm905, %v903, %v900
    %v907 = vadd.f32 %v809, 1.0
    %v908 = vlog2.pop %v907
    %v909 = vmul.f32 %v908, 0.6931472
    %v910 = vmul.f32 -0.5, %v809
    %v911 = vadd.f32 %v910, 1.0
    %v912 = vmul.f32 %v911, %v809
    %v913 = vand.u32 2147483647, %v809
    %vm914 = vcmp.lt.f32.partialorder %v913, 0.0004427343
    %v915 = vsel %vm914, %v912, %v909
    %v916 = vadd.f32 %v811, 1.0
    %v917 = vlog2.pop %v916
    %v918 = vmul.f32 %v917, 0.6931472
    %v919 = vmul.f32 -0.5, %v811
    %v920 = vadd.f32 %v919, 1.0
    %v921 = vmul.f32 %v920, %v811
    %v922 = vand.u32 2147483647, %v811
    %vm923 = vcmp.lt.f32.partialorder %v922, 0.0004427343
    %v924 = vsel %vm923, %v921, %v918
    %v925 = vadd.f32 %v813, 1.0
    %v926 = vlog2.pop %v925
    %v927 = vmul.f32 %v926, 0.6931472
    %v928 = vmul.f32 -0.5, %v813
    %v929 = vadd.f32 %v928, 1.0
    %v930 = vmul.f32 %v929, %v813
    %v931 = vand.u32 2147483647, %v813
    %vm932 = vcmp.lt.f32.partialorder %v931, 0.0004427343
    %v933 = vsel %vm932, %v930, %v927
    %v934 = vadd.f32 %v815, 1.0
    %v935 = vlog2.pop %v934
    %v936 = vmul.f32 %v935, 0.6931472
    %v937 = vmul.f32 -0.5, %v815
    %v938 = vadd.f32 %v937, 1.0
    %v939 = vmul.f32 %v938, %v815
    %v940 = vand.u32 2147483647, %v815
    %vm941 = vcmp.lt.f32.partialorder %v940, 0.0004427343
    %v942 = vsel %vm941, %v939, %v936
    %v943 = vadd.f32 %v817, 1.0
    %v944 = vlog2.pop %v943
    %v945 = vmul.f32 %v944, 0.6931472
    %v946 = vmul.f32 -0.5, %v817
    %v947 = vadd.f32 %v946, 1.0
    %v948 = vmul.f32 %v947, %v817
    %v949 = vand.u32 2147483647, %v817
    %vm950 = vcmp.lt.f32.partialorder %v949, 0.0004427343
    %v951 = vsel %vm950, %v948, %v945
    %v952 = vadd.f32 %v819, 1.0
    %v953 = vlog2.pop %v952
    %v954 = vmul.f32 %v953, 0.6931472
    %v955 = vmul.f32 -0.5, %v819
    %v956 = vadd.f32 %v955, 1.0
    %v957 = vmul.f32 %v956, %v819
    %v958 = vand.u32 2147483647, %v819
    %vm959 = vcmp.lt.f32.partialorder %v958, 0.0004427343
    %v960 = vsel %vm959, %v957, %v954
    %v961 = vadd.f32 %v821, 1.0
    %v962 = vlog2.pop %v961
    %v963 = vmul.f32 %v962, 0.6931472
    %v964 = vmul.f32 -0.5, %v821
    %v965 = vadd.f32 %v964, 1.0
    %v966 = vmul.f32 %v965, %v821
    %v967 = vand.u32 2147483647, %v821
    %vm968 = vcmp.lt.f32.partialorder %v967, 0.0004427343
    %v969 = vsel %vm968, %v966, %v963
    %v970 = vadd.f32 %v823, 1.0
    %v971 = vlog2.pop %v970
    %v972 = vmul.f32 %v971, 0.6931472
    %v973 = vmul.f32 -0.5, %v823
    %v974 = vadd.f32 %v973, 1.0
    %v975 = vmul.f32 %v974, %v823
    %v976 = vand.u32 2147483647, %v823
    %vm977 = vcmp.lt.f32.partialorder %v976, 0.0004427343
    %v978 = vsel %vm977, %v975, %v972
    %v979 = vadd.f32 %v825, 1.0
    %v980 = vlog2.pop %v979
    %v981 = vmul.f32 %v980, 0.6931472
    %v982 = vmul.f32 -0.5, %v825
    %v983 = vadd.f32 %v982, 1.0
    %v984 = vmul.f32 %v983, %v825
    %v985 = vand.u32 2147483647, %v825
    %vm986 = vcmp.lt.f32.partialorder %v985, 0.0004427343
    %v987 = vsel %vm986, %v984, %v981
    %v988 = vadd.f32 %v827, 1.0
    %v989 = vlog2.pop %v988
    %v990 = vmul.f32 %v989, 0.6931472
    %v991 = vmul.f32 -0.5, %v827
    %v992 = vadd.f32 %v991, 1.0
    %v993 = vmul.f32 %v992, %v827
    %v994 = vand.u32 2147483647, %v827
    %vm995 = vcmp.lt.f32.partialorder %v994, 0.0004427343
    %v996 = vsel %vm995, %v993, %v990
    %v997 = vadd.f32 %v829, 1.0
    %v998 = vlog2.pop %v997
    %v999 = vmul.f32 %v998, 0.6931472
    %v1000 = vmul.f32 -0.5, %v829
    %v1001 = vadd.f32 %v1000, 1.0
    %v1002 = vmul.f32 %v1001, %v829
    %v1003 = vand.u32 2147483647, %v829
    %vm1004 = vcmp.lt.f32.partialorder %v1003, 0.0004427343
    %v1005 = vsel %vm1004, %v1002, %v999
    %v1006 = vadd.f32 %v831, 1.0
    %v1007 = vlog2.pop %v1006
    %v1008 = vmul.f32 %v1007, 0.6931472
    %v1009 = vmul.f32 -0.5, %v831
    %v1010 = vadd.f32 %v1009, 1.0
    %v1011 = vmul.f32 %v1010, %v831
    %v1012 = vand.u32 2147483647, %v831
    %vm1013 = vcmp.lt.f32.partialorder %v1012, 0.0004427343
    %v1014 = vsel %vm1013, %v1011, %v1008
    %v1015 = vadd.f32 %v833, 1.0
    %v1016 = vlog2.pop %v1015
    %v1017 = vmul.f32 %v1016, 0.6931472
    %v1018 = vmul.f32 -0.5, %v833
    %v1019 = vadd.f32 %v1018, 1.0
    %v1020 = vmul.f32 %v1019, %v833
    %v1021 = vand.u32 2147483647, %v833
    %vm1022 = vcmp.lt.f32.partialorder %v1021, 0.0004427343
    %v1023 = vsel %vm1022, %v1020, %v1017
    %v1024 = vadd.f32 %v835, 1.0
    %v1025 = vlog2.pop %v1024
    %v1026 = vmul.f32 %v1025, 0.6931472
    %v1027 = vmul.f32 -0.5, %v835
    %v1028 = vadd.f32 %v1027, 1.0
    %v1029 = vmul.f32 %v1028, %v835
    %v1030 = vand.u32 2147483647, %v835
    %vm1031 = vcmp.lt.f32.partialorder %v1030, 0.0004427343
    %v1032 = vsel %vm1031, %v1029, %v1026
    %v1033 = vadd.f32 %v837, 1.0
    %v1034 = vlog2.pop %v1033
    %v1035 = vmul.f32 %v1034, 0.6931472
    %v1036 = vmul.f32 -0.5, %v837
    %v1037 = vadd.f32 %v1036, 1.0
    %v1038 = vmul.f32 %v1037, %v837
    %v1039 = vand.u32 2147483647, %v837
    %vm1040 = vcmp.lt.f32.partialorder %v1039, 0.0004427343
    %v1041 = vsel %vm1040, %v1038, %v1035
    %v1042 = vadd.f32 %v839, 1.0
    %v1043 = vlog2.pop %v1042
    %v1044 = vmul.f32 %v1043, 0.6931472
    %v1045 = vmul.f32 -0.5, %v839
    %v1046 = vadd.f32 %v1045, 1.0
    %v1047 = vmul.f32 %v1046, %v839
    %v1048 = vand.u32 2147483647, %v839
    %vm1049 = vcmp.lt.f32.partialorder %v1048, 0.0004427343
    %v1050 = vsel %vm1049, %v1047, %v1044
    %v1051 = vadd.f32 %v841, 1.0
    %v1052 = vlog2.pop %v1051
    %v1053 = vmul.f32 %v1052, 0.6931472
    %v1054 = vmul.f32 -0.5, %v841
    %v1055 = vadd.f32 %v1054, 1.0
    %v1056 = vmul.f32 %v1055, %v841
    %v1057 = vand.u32 2147483647, %v841
    %vm1058 = vcmp.lt.f32.partialorder %v1057, 0.0004427343
    %v1059 = vsel %vm1058, %v1056, %v1053
    %v1060 = vadd.f32 %v843, 1.0
    %v1061 = vlog2.pop %v1060
    %v1062 = vmul.f32 %v1061, 0.6931472
    %v1063 = vmul.f32 -0.5, %v843
    %v1064 = vadd.f32 %v1063, 1.0
    %v1065 = vmul.f32 %v1064, %v843
    %v1066 = vand.u32 2147483647, %v843
    %vm1067 = vcmp.lt.f32.partialorder %v1066, 0.0004427343
    %v1068 = vsel %vm1067, %v1065, %v1062
    %v1069 = vadd.f32 %v845, 1.0
    %v1070 = vlog2.pop %v1069
    %v1071 = vmul.f32 %v1070, 0.6931472
    %v1072 = vmul.f32 -0.5, %v845
    %v1073 = vadd.f32 %v1072, 1.0
    %v1074 = vmul.f32 %v1073, %v845
    %v1075 = vand.u32 2147483647, %v845
    %vm1076 = vcmp.lt.f32.partialorder %v1075, 0.0004427343
    %v1077 = vsel %vm1076, %v1074, %v1071
    %v1078 = vadd.f32 %v847, 1.0
    %v1079 = vlog2.pop %v1078
    %v1080 = vmul.f32 %v1079, 0.6931472
    %v1081 = vmul.f32 -0.5, %v847
    %v1082 = vadd.f32 %v1081, 1.0
    %v1083 = vmul.f32 %v1082, %v847
    %v1084 = vand.u32 2147483647, %v847
    %vm1085 = vcmp.lt.f32.partialorder %v1084, 0.0004427343
    %v1086 = vsel %vm1085, %v1083, %v1080
    %v1087 = vadd.f32 %v849, 1.0
    %v1088 = vlog2.pop %v1087
    %v1089 = vmul.f32 %v1088, 0.6931472
    %v1090 = vmul.f32 -0.5, %v849
    %v1091 = vadd.f32 %v1090, 1.0
    %v1092 = vmul.f32 %v1091, %v849
    %v1093 = vand.u32 2147483647, %v849
    %vm1094 = vcmp.lt.f32.partialorder %v1093, 0.0004427343
    %v1095 = vsel %vm1094, %v1092, %v1089
    %v1096 = vadd.f32 %v851, 1.0
    %v1097 = vlog2.pop %v1096
    %v1098 = vmul.f32 %v1097, 0.6931472
    %v1099 = vmul.f32 -0.5, %v851
    %v1100 = vadd.f32 %v1099, 1.0
    %v1101 = vmul.f32 %v1100, %v851
    %v1102 = vand.u32 2147483647, %v851
    %vm1103 = vcmp.lt.f32.partialorder %v1102, 0.0004427343
    %v1104 = vsel %vm1103, %v1101, %v1098
    %v1105 = vadd.f32 %v853, 1.0
    %v1106 = vlog2.pop %v1105
    %v1107 = vmul.f32 %v1106, 0.6931472
    %v1108 = vmul.f32 -0.5, %v853
    %v1109 = vadd.f32 %v1108, 1.0
    %v1110 = vmul.f32 %v1109, %v853
    %v1111 = vand.u32 2147483647, %v853
    %vm1112 = vcmp.lt.f32.partialorder %v1111, 0.0004427343
    %v1113 = vsel %vm1112, %v1110, %v1107
    %v1114 = vadd.f32 %v855, 1.0
    %v1115 = vlog2.pop %v1114
    %v1116 = vmul.f32 %v1115, 0.6931472
    %v1117 = vmul.f32 -0.5, %v855
    %v1118 = vadd.f32 %v1117, 1.0
    %v1119 = vmul.f32 %v1118, %v855
    %v1120 = vand.u32 2147483647, %v855
    %vm1121 = vcmp.lt.f32.partialorder %v1120, 0.0004427343
    %v1122 = vsel %vm1121, %v1119, %v1116
    %v1123 = vadd.f32 %v857, 1.0
    %v1124 = vlog2.pop %v1123
    %v1125 = vmul.f32 %v1124, 0.6931472
    %v1126 = vmul.f32 -0.5, %v857
    %v1127 = vadd.f32 %v1126, 1.0
    %v1128 = vmul.f32 %v1127, %v857
    %v1129 = vand.u32 2147483647, %v857
    %vm1130 = vcmp.lt.f32.partialorder %v1129, 0.0004427343
    %v1131 = vsel %vm1130, %v1128, %v1125
    %v1132 = vadd.f32 %v859, 1.0
    %v1133 = vlog2.pop %v1132
    %v1134 = vmul.f32 %v1133, 0.6931472
    %v1135 = vmul.f32 -0.5, %v859
    %v1136 = vadd.f32 %v1135, 1.0
    %v1137 = vmul.f32 %v1136, %v859
    %v1138 = vand.u32 2147483647, %v859
    %vm1139 = vcmp.lt.f32.partialorder %v1138, 0.0004427343
    %v1140 = vsel %vm1139, %v1137, %v1134
    %v1141 = vadd.f32 %v861, 1.0
    %v1142 = vlog2.pop %v1141
    %v1143 = vmul.f32 %v1142, 0.6931472
    %v1144 = vmul.f32 -0.5, %v861
    %v1145 = vadd.f32 %v1144, 1.0
    %v1146 = vmul.f32 %v1145, %v861
    %v1147 = vand.u32 2147483647, %v861
    %vm1148 = vcmp.lt.f32.partialorder %v1147, 0.0004427343
    %v1149 = vsel %vm1148, %v1146, %v1143
    %v1150 = vmax.f32 %v655, 0.0
    %v1151 = vmax.f32 %v657, 0.0
    %v1152 = vmax.f32 %v660, 0.0
    %v1153 = vmax.f32 %v662, 0.0
    %v1154 = vmax.f32 %v665, 0.0
    %v1155 = vmax.f32 %v667, 0.0
    %v1156 = vmax.f32 %v670, 0.0
    %v1157 = vmax.f32 %v672, 0.0
    %v1158 = vmax.f32 %v675, 0.0
    %v1159 = vmax.f32 %v677, 0.0
    %v1160 = vmax.f32 %v680, 0.0
    %v1161 = vmax.f32 %v682, 0.0
    %v1162 = vmax.f32 %v685, 0.0
    %v1163 = vmax.f32 %v687, 0.0
    %v1164 = vmax.f32 %v690, 0.0
    %v1165 = vmax.f32 %v692, 0.0
    %v1166 = vmax.f32 %v695, 0.0
    %v1167 = vmax.f32 %v697, 0.0
    %v1168 = vmax.f32 %v700, 0.0
    %v1169 = vmax.f32 %v702, 0.0
    %v1170 = vmax.f32 %v705, 0.0
    %v1171 = vmax.f32 %v707, 0.0
    %v1172 = vmax.f32 %v710, 0.0
    %v1173 = vmax.f32 %v712, 0.0
    %v1174 = vmax.f32 %v715, 0.0
    %v1175 = vmax.f32 %v717, 0.0
    %v1176 = vmax.f32 %v720, 0.0
    %v1177 = vmax.f32 %v722, 0.0
    %v1178 = vmax.f32 %v725, 0.0
    %v1179 = vmax.f32 %v727, 0.0
    %v1180 = vmax.f32 %v730, 0.0
    %v1181 = vmax.f32 %v732, 0.0
    %v1182 = vadd.f32 %v870, %v1150
    %v1183 = vadd.f32 %v879, %v1151
    %v1184 = vadd.f32 %v888, %v1152
    %v1185 = vadd.f32 %v897, %v1153
    %v1186 = vadd.f32 %v906, %v1154
    %v1187 = vadd.f32 %v915, %v1155
    %v1188 = vadd.f32 %v924, %v1156
    %v1189 = vadd.f32 %v933, %v1157
    %v1190 = vadd.f32 %v942, %v1158
    %v1191 = vadd.f32 %v951, %v1159
    %v1192 = vadd.f32 %v960, %v1160
    %v1193 = vadd.f32 %v969, %v1161
    %v1194 = vadd.f32 %v978, %v1162
    %v1195 = vadd.f32 %v987, %v1163
    %v1196 = vadd.f32 %v996, %v1164
    %v1197 = vadd.f32 %v1005, %v1165
    %v1198 = vadd.f32 %v1014, %v1166
    %v1199 = vadd.f32 %v1023, %v1167
    %v1200 = vadd.f32 %v1032, %v1168
    %v1201 = vadd.f32 %v1041, %v1169
    %v1202 = vadd.f32 %v1050, %v1170
    %v1203 = vadd.f32 %v1059, %v1171
    %v1204 = vadd.f32 %v1068, %v1172
    %v1205 = vadd.f32 %v1077, %v1173
    %v1206 = vadd.f32 %v1086, %v1174
    %v1207 = vadd.f32 %v1095, %v1175
    %v1208 = vadd.f32 %v1104, %v1176
    %v1209 = vadd.f32 %v1113, %v1177
    %v1210 = vadd.f32 %v1122, %v1178
    %v1211 = vadd.f32 %v1131, %v1179
    %v1212 = vadd.f32 %v1140, %v1180
    %v1213 = vadd.f32 %v1149, %v1181
    %v1214 = vadd.f32 %v1182, 1.0
    %v1215 = vadd.f32 %v1183, 1.0
    %v1216 = vadd.f32 %v1184, 1.0
    %v1217 = vadd.f32 %v1185, 1.0
    %v1218 = vadd.f32 %v1186, 1.0
    %v1219 = vadd.f32 %v1187, 1.0
    %v1220 = vadd.f32 %v1188, 1.0
    %v1221 = vadd.f32 %v1189, 1.0
    %v1222 = vadd.f32 %v1190, 1.0
    %v1223 = vadd.f32 %v1191, 1.0
    %v1224 = vadd.f32 %v1192, 1.0
    %v1225 = vadd.f32 %v1193, 1.0
    %v1226 = vadd.f32 %v1194, 1.0
    %v1227 = vadd.f32 %v1195, 1.0
    %v1228 = vadd.f32 %v1196, 1.0
    %v1229 = vadd.f32 %v1197, 1.0
    %v1230 = vadd.f32 %v1198, 1.0
    %v1231 = vadd.f32 %v1199, 1.0
    %v1232 = vadd.f32 %v1200, 1.0
    %v1233 = vadd.f32 %v1201, 1.0
    %v1234 = vadd.f32 %v1202, 1.0
    %v1235 = vadd.f32 %v1203, 1.0
    %v1236 = vadd.f32 %v1204, 1.0
    %v1237 = vadd.f32 %v1205, 1.0
    %v1238 = vadd.f32 %v1206, 1.0
    %v1239 = vadd.f32 %v1207, 1.0
    %v1240 = vadd.f32 %v1208, 1.0
    %v1241 = vadd.f32 %v1209, 1.0
    %v1242 = vadd.f32 %v1210, 1.0
    %v1243 = vadd.f32 %v1211, 1.0
    %v1244 = vadd.f32 %v1212, 1.0
    %v1245 = vadd.f32 %v1213, 1.0
    %v1246 = vlaneseq
    %v1247 = vand.u32 %v1246, 127
    %vm1248 = vcmp.eq.s32.totalorder %v1247, 0
    %v1249 = vsel %vm1248, %v655, %v1214
    %v1250 = vsel %vm1248, %v657, %v1215
    %v1251 = vsel %vm1248, %v660, %v1216
    %v1252 = vsel %vm1248, %v662, %v1217
    %v1253 = vsel %vm1248, %v665, %v1218
    %v1254 = vsel %vm1248, %v667, %v1219
    %v1255 = vsel %vm1248, %v670, %v1220
    %v1256 = vsel %vm1248, %v672, %v1221
    %v1257 = vsel %vm1248, %v675, %v1222
    %v1258 = vsel %vm1248, %v677, %v1223
    %v1259 = vsel %vm1248, %v680, %v1224
    %v1260 = vsel %vm1248, %v682, %v1225
    %v1261 = vsel %vm1248, %v685, %v1226
    %v1262 = vsel %vm1248, %v687, %v1227
    %v1263 = vsel %vm1248, %v690, %v1228
    %v1264 = vsel %vm1248, %v692, %v1229
    %v1265 = vsel %vm1248, %v695, %v1230
    %v1266 = vsel %vm1248, %v697, %v1231
    %v1267 = vsel %vm1248, %v700, %v1232
    %v1268 = vsel %vm1248, %v702, %v1233
    %v1269 = vsel %vm1248, %v705, %v1234
    %v1270 = vsel %vm1248, %v707, %v1235
    %v1271 = vsel %vm1248, %v710, %v1236
    %v1272 = vsel %vm1248, %v712, %v1237
    %v1273 = vsel %vm1248, %v715, %v1238
    %v1274 = vsel %vm1248, %v717, %v1239
    %v1275 = vsel %vm1248, %v720, %v1240
    %v1276 = vsel %vm1248, %v722, %v1241
    %v1277 = vsel %vm1248, %v725, %v1242
    %v1278 = vsel %vm1248, %v727, %v1243
    %v1279 = vsel %vm1248, %v730, %v1244
    %v1280 = vsel %vm1248, %v732, %v1245
    %1281 = vst [vmem:[#allocation2] sm:$0xff] %v1249
    %1282 = vst [vmem:[#allocation2 + $0x8] sm:$0xff] %v1250
    %1283 = vst [vmem:[#allocation2 + $0x10] sm:$0xff] %v1251
    %1284 = vst [vmem:[#allocation2 + $0x18] sm:$0xff] %v1252
    %1285 = vst [vmem:[#allocation2 + $0x20] sm:$0xff] %v1253
    %1286 = vst [vmem:[#allocation2 + $0x28] sm:$0xff] %v1254
    %1287 = vst [vmem:[#allocation2 + $0x30] sm:$0xff] %v1255
    %1288 = vst [vmem:[#allocation2 + $0x38] sm:$0xff] %v1256
    %1289 = vst [vmem:[#allocation2 + $0x40] sm:$0xff] %v1257
    %1290 = vst [vmem:[#allocation2 + $0x48] sm:$0xff] %v1258
    %1291 = vst [vmem:[#allocation2 + $0x50] sm:$0xff] %v1259
    %1292 = vst [vmem:[#allocation2 + $0x58] sm:$0xff] %v1260
    %1293 = vst [vmem:[#allocation2 + $0x60] sm:$0xff] %v1261
    %1294 = vst [vmem:[#allocation2 + $0x68] sm:$0xff] %v1262
    %1295 = vst [vmem:[#allocation2 + $0x70] sm:$0xff] %v1263
    %1296 = vst [vmem:[#allocation2 + $0x78] sm:$0xff] %v1264
    %1297 = vst [vmem:[#allocation2 + $0x80] sm:$0xff] %v1265
    %1298 = vst [vmem:[#allocation2 + $0x88] sm:$0xff] %v1266
    %1299 = vst [vmem:[#allocation2 + $0x90] sm:$0xff] %v1267
    %1300 = vst [vmem:[#allocation2 + $0x98] sm:$0xff] %v1268
    %1301 = vst [vmem:[#allocation2 + $0xa0] sm:$0xff] %v1269
    %1302 = vst [vmem:[#allocation2 + $0xa8] sm:$0xff] %v1270
    %1303 = vst [vmem:[#allocation2 + $0xb0] sm:$0xff] %v1271
    %1304 = vst [vmem:[#allocation2 + $0xb8] sm:$0xff] %v1272
    %1305 = vst [vmem:[#allocation2 + $0xc0] sm:$0xff] %v1273
    %1306 = vst [vmem:[#allocation2 + $0xc8] sm:$0xff] %v1274
    %1307 = vst [vmem:[#allocation2 + $0xd0] sm:$0xff] %v1275
    %1308 = vst [vmem:[#allocation2 + $0xd8] sm:$0xff] %v1276
    %1309 = vst [vmem:[#allocation2 + $0xe0] sm:$0xff] %v1277
    %1310 = vst [vmem:[#allocation2 + $0xe8] sm:$0xff] %v1278
    %1311 = vst [vmem:[#allocation2 + $0xf0] sm:$0xff] %v1279
    %1312 = vst [vmem:[#allocation2 + $0xf8] sm:$0xff] %v1280
    // Predicated region
    $region22: #{tpu_custom_call.1} parent=1 // pred_check
      _
    $region23: #{tpu_custom_call.1} parent=1 // pred_check_branch
      %1314 = sbr.rel (0) target = $region25
    $region24: #{tpu_custom_call.1} parent=1 // pred_region
      %1316 = vsyncadd [#allocation3], 0
      %s1317 = sshll.u32 [#allocation2], 4
      %s1318 = int_to_ptr.vmem [resolvable:$true] %s1317
      %s1319 = sshll.u32 %s5, 4
      %s1320 = int_to_ptr.hbm [resolvable:$true] %s1319
      %1325 = dma.vmem_to_hbm [thread:$0]  %s1318, 4096, %s1320, [#allocation3], 128, 128, 8
    $region25: #{tpu_custom_call.1} parent=1 // pred_fallthru
      _
    // Predicated region
    $region26: #{tpu_custom_call.1} parent=1 // pred_check
      _
    $region27: #{tpu_custom_call.1} parent=1 // pred_check_branch
      %1327 = sbr.rel (0) target = $region29
    $region28: #{tpu_custom_call.1} parent=1 // pred_region
      %1329 = dma.done [#allocation3], 4096
    $region29: #{tpu_custom_call.1} parent=1 // pred_fallthru
      _
    %1330 = vsyncpa [#allocation3], 1

</llo_original>
